<compile_context>
chip_gen: v6e
topology: v6e:2x2x1
jax: 0.10.0
libtpu: 0.0.40
codegen_flags: <defaults>
</compile_context>

<pallas_src>
import jax
import jax.numpy as jnp
from jax.experimental import pallas as pl
from jax.experimental.pallas import tpu as pltpu

OPENAI_DATASET_MEAN = (0.48145466, 0.4578275, 0.40821073)
OPENAI_DATASET_STD = (0.26862954, 0.26130258, 0.27577711)

_VMEM = pl.BlockSpec(memory_space=pltpu.MemorySpace.VMEM)


def _round_up(v, m):
    return (v + m - 1) // m * m


# ---------------------------------------------------------------------------
# Fused kernel:
#   d_ref  : (N, P, PD)  bf16  raw pixel-difference patches (channel-fastest)
#   w_ref  : (PD, Epad)  bf16  folded weights  diag(1/std) @ We @ Wp * (1/P)
#   out_ref: (1, Epad)   f32   per-lane partial sums of |x_feats - gt_feats|
#
# Because the encoder is linear, dataset mean and both biases cancel in the
# x - gt difference, so only the difference path is computed.
# ---------------------------------------------------------------------------
def _clip_diff_kernel(d_ref, w_ref, out_ref):
    # mean-pool over patches as a sublane-axis sum (VPU/XLU slot, not MXU);
    # accumulate the bf16 inputs in f32, 1/P is already folded into w_ref.
    pooled = jnp.sum(d_ref[...].astype(jnp.float32), axis=1)          # (N, PD)
    feat = jnp.dot(pooled.astype(jnp.bfloat16), w_ref[...],
                   preferred_element_type=jnp.float32)                # (N, Epad)
    # lane-dense (1, Epad) store; padded columns are exactly zero.
    out_ref[...] = jnp.sum(jnp.abs(feat), axis=0, keepdims=True)


# ---------------------------------------------------------------------------
# Plain-JAX glue (NHWC): nearest resize (F.interpolate default) + patchify.
# ---------------------------------------------------------------------------
def _nearest_resize_nhwc(x, out_hw):
    n, h, w, c = x.shape
    oh, ow = out_hw
    hi = (jnp.arange(oh) * h) // oh           # floor(i*in/out) == mode='nearest'
    wi = (jnp.arange(ow) * w) // ow
    return x[:, hi][:, :, wi]


def _patchify_nhwc(x, patch):
    # (N, H, W, C) -> (N, P, patch*patch*C), channel-fastest rows
    n, h, w, c = x.shape
    hp, wp = h // patch, w // patch
    x = x.reshape(n, hp, patch, wp, patch, c)
    x = x.transpose(0, 1, 3, 2, 4, 5)                 # N, Hp, Wp, ph, pw, C
    return x.reshape(n, hp * wp, patch * patch * c)


class CLIPLossPallas:
    def __init__(self, img_size=(32, 32), patch=16, hidden=128, embed=128,
                 loss_weight=1.0, key=jax.random.PRNGKey(0)):
        self.img_size = img_size
        self.patch = patch
        self.hidden = hidden
        self.embed = embed
        self.loss_weight = float(loss_weight)
        self.n_patches = (img_size[0] // patch) * (img_size[1] // patch)

        c = 3
        patch_dim = patch * patch * c
        k1, k2, k3, k4 = jax.random.split(key, 4)
        # deterministic synthetic encoder weights
        self.w_embed = jax.random.normal(k1, (patch_dim, hidden), jnp.float32) * 0.02
        self.b_embed = jax.random.normal(k2, (1, hidden), jnp.float32) * 0.02
        self.w_proj = jax.random.normal(k3, (hidden, embed), jnp.float32) * 0.02
        self.b_proj = jax.random.normal(k4, (1, embed), jnp.float32) * 0.02

        mean = jnp.asarray(OPENAI_DATASET_MEAN, jnp.float32)
        std = jnp.asarray(OPENAI_DATASET_STD, jnp.float32)
        # channel-fastest tiling matches the (ph, pw, C) patch layout
        self.mean_vec = jnp.tile(mean, patch * patch).reshape(1, patch_dim)
        self.inv_std_vec = jnp.tile(1.0 / std, patch * patch).reshape(1, patch_dim)

        # --- algebraic folding --------------------------------------------
        # normalize(x) - normalize(gt) = (x - gt) * inv_std   (mean cancels)
        # feats(x) - feats(gt) = pool(diff_patches) @ [diag(1/std) @ We @ Wp]
        # (biases cancel); 1/P of the mean-pool is folded in as well.
        self.embed_pad = _round_up(embed, 128)
        w = jnp.dot(self.inv_std_vec.reshape(patch_dim, 1) * self.w_embed,
                    self.w_proj, precision=jax.lax.Precision.HIGHEST)   # (PD, E)
        w = w * (1.0 / self.n_patches)
        w = jnp.pad(w, ((0, 0), (0, self.embed_pad - embed)))
        self.w_fold = w.astype(jnp.bfloat16)                            # (PD, Epad)

    def __call__(self, x, gt):
        # x, gt: NCHW float images (PyTorch layout at the boundary)
        d = x.astype(jnp.float32) - gt.astype(jnp.float32)       # diff FIRST
        d = jnp.transpose(d, (0, 2, 3, 1))                        # -> NHWC
        d = _nearest_resize_nhwc(d, self.img_size)
        dp = _patchify_nhwc(d, self.patch)                        # (N, P, PD)
        n, p, pd = dp.shape
        dp = dp.astype(jnp.bfloat16)                              # halve DMA bytes

        cost = pl.CostEstimate(
            flops=2 * n * pd * self.embed_pad,
            transcendentals=0,
            bytes_accessed=dp.size * 2 + self.w_fold.size * 2 + self.embed_pad * 4)

        partial = pl.pallas_call(
            _clip_diff_kernel,
            out_shape=jax.ShapeDtypeStruct((1, self.embed_pad), jnp.float32),
            in_specs=[_VMEM, _VMEM],
            out_specs=_VMEM,
            cost_estimate=cost,
        )(dp, self.w_fold)

        # L1 mean + loss weight applied in XLA (padded lanes contribute 0).
        scale = self.loss_weight / float(n * self.embed)
        return jnp.sum(partial) * scale

    # Pure-JAX reference following the ORIGINAL (unfolded) structure:
    # resize -> normalize -> embed+bias -> pool -> proj+bias -> L1 mean * weight.
    def reference(self, x, gt):
        def encode(img):
            img = jnp.transpose(img.astype(jnp.float32), (0, 2, 3, 1))
            img = _nearest_resize_nhwc(img, self.img_size)
            patches = _patchify_nhwc(img, self.patch)            # (N, P, PD)
            xn = (patches - self.mean_vec) * self.inv_std_vec
            tok = jnp.dot(xn, self.w_embed,
                          precision=jax.lax.Precision.HIGHEST) + self.b_embed
            pooled = tok.mean(axis=1)                            # (N, H)
            return jnp.dot(pooled, self.w_proj,
                           precision=jax.lax.Precision.HIGHEST) + self.b_proj
        fx, fg = encode(x), encode(gt)
        return jnp.mean(jnp.abs(fx - fg)) * self.loss_weight


if __name__ == "__main__":
    key = jax.random.PRNGKey(0)
    kx, kg, kp = jax.random.split(key, 3)

    # small inputs: batch=2, channels=3 (RGB required by CLIP normalize), 16x16
    x = jax.random.uniform(kx, (2, 3, 16, 16), jnp.float32)
    gt = jax.random.uniform(kg, (2, 3, 16, 16), jnp.float32)

    loss_fn = CLIPLossPallas(img_size=(32, 32), patch=16, hidden=128, embed=128,
                             loss_weight=1.0, key=kp)

    loss = jax.jit(lambda a, b: loss_fn(a, b))(x, gt)
    jax.block_until_ready(loss)
    assert loss.shape == () and jnp.isfinite(loss)

    ref = loss_fn.reference(x, gt)
    jax.block_until_ready(ref)
    # bf16 MXU operands (f32 accumulation) vs f32 HIGHEST reference
    assert jnp.allclose(loss, ref, rtol=2e-2, atol=1e-4), (loss, ref)

    print("KERNEL_OK")
</pallas_src>

<mosaic_0001>
module attributes {stable_mosaic.version = 11 : i64} {
  func.func @_clip_diff_kernel(%arg0: memref<2x4x768xbf16, #tpu.memory_space<vmem>>, %arg1: memref<768x128xbf16, #tpu.memory_space<vmem>>, %arg2: memref<1x128xf32, #tpu.memory_space<vmem>>) attributes {dimension_semantics = [], scalar_prefetch = 0 : i64, scratch_operands = 0 : i64, tpu.core_type = #tpu.core_type<tc>} {
    %c0 = arith.constant 0 : index
    %c0_0 = arith.constant 0 : index
    %c0_1 = arith.constant 0 : index
    %0 = vector.load %arg0[%c0, %c0_0, %c0_1] : memref<2x4x768xbf16, #tpu.memory_space<vmem>>, vector<2x4x768xbf16>
    %1 = arith.extf %0 : vector<2x4x768xbf16> to vector<2x4x768xf32>
    %cst = arith.constant dense<0.000000e+00> : vector<2x768xf32>
    %2 = vector.multi_reduction <add>, %1, %cst [1] : vector<2x4x768xf32> to vector<2x768xf32>
    %3 = arith.truncf %2 : vector<2x768xf32> to vector<2x768xbf16>
    %c0_2 = arith.constant 0 : index
    %c0_3 = arith.constant 0 : index
    %4 = vector.load %arg1[%c0_2, %c0_3] : memref<768x128xbf16, #tpu.memory_space<vmem>>, vector<768x128xbf16>
    %cst_4 = arith.constant dense<0.000000e+00> : vector<2x128xf32>
    %5 = tpu.matmul %3, %4, %cst_4 {dimension_numbers = #tpu.dot_dimension_numbers<[1], [0], [0], [1], [0, 0, 1, 1], [], []>} : vector<2x768xbf16>, vector<768x128xbf16>, vector<2x128xf32> -> vector<2x128xf32>
    %6 = math.absf %5 : vector<2x128xf32>
    %cst_5 = arith.constant dense<0.000000e+00> : vector<128xf32>
    %7 = vector.multi_reduction <add>, %6, %cst_5 [0] : vector<2x128xf32> to vector<128xf32>
    %8 = vector.shape_cast %7 : vector<128xf32> to vector<1x128xf32>
    %c0_6 = arith.constant 0 : index
    %c0_7 = arith.constant 0 : index
    %9 = vector.load %arg2[%c0_6, %c0_7] : memref<1x128xf32, #tpu.memory_space<vmem>>, vector<1x128xf32>
    tpu.vector_store %arg2[%c0_6, %c0_7], %8 {strides = array<i32>} : memref<1x128xf32, #tpu.memory_space<vmem>>, vector<1x128xf32>,
    return
  }
}

</mosaic_0001>

<llo_original>
// kernel: _lambda_.1
$region0: #{_lambda_.1}
  #allocation0 [shape = 'u32[]', space=smem, size = 0x4, offset = 0x4, fixed_abs, tag = 'smem constant byte address 0x4 - core index']
  #allocation1 [shape = 'u32[144,128]{1,0:T(1,128)}', space=vmem, size = 0x12000, scoped, tag = 'internal scratch']
  %s0 = inlined_call_operand.vmem [shape: bf16[2,4,768], index: 0, kind: input, shape index: {}]
  %s1 = inlined_call_operand.vmem [shape: bf16[768,128], index: 1, kind: input, shape index: {}]
  %s2 = inlined_call_operand.vmem [shape: f32[1,128], index: 2, kind: output, shape index: {}]
  %s3 = sld [smem:[#allocation0]]
  $region18: #{_lambda_.1} parent=0
    _
  %s5 = ssub.s32 1, %s3
  %s6 = scalar_select 0, %s5, %s3
  // Predicated region
  $region2: #{_lambda_.1} parent=0 // pred_check
    _
  $region3: #{_lambda_.1} parent=0 // pred_check_branch
    %8 = sbr.rel (0) target = $region5
  $region4: #{_lambda_.1} parent=0 // pred_region
    _
  $region5: #{_lambda_.1} parent=0 // pred_fallthru
    _
  // Predicated region
  $region6: #{_lambda_.1} parent=0 // pred_check
    _
  $region7: #{_lambda_.1} parent=0 // pred_check_branch
    %10 = sbr.rel (0) target = $region9
  $region8: #{_lambda_.1} parent=0 // pred_region
    _
  $region9: #{_lambda_.1} parent=0 // pred_fallthru
    _
  %v12 = vld [vmem:[%s0] sm:$0xff]
  %v13 = vld [vmem:[%s0 + $0x8] sm:$0xf]
  %v14 = vld [vmem:[%s0 + $0xc] sm:$0xff]
  %v15 = vld [vmem:[%s0 + $0x14] sm:$0xf]
  %v16 = vunpack.c.l.bf16 %v12
  %v17 = vunpack.c.h.bf16 %v12
  %v18 = vunpack.c.l.bf16 %v13
  %v19 = vunpack.c.l.bf16 %v14
  %v20 = vunpack.c.h.bf16 %v14
  %v21 = vunpack.c.l.bf16 %v15
  %v28 = vcombine.high %v16, %v16
  %v29 = vcombine.high %v17, %v17
  %v30 = vcombine.high %v18, %v18
  %v31 = vcombine.high %v19, %v19
  %v32 = vcombine.high %v20, %v20
  %v33 = vcombine.high %v21, %v21
  %vm40 = vcmask 1043456
  %v41 = vsel %vm40, %v16, 0.0
  %v42 = vrot.slane %v41, 4
  %v43 = vadd.f32 %v41, %v42
  %v44 = vrot.slane %v43, 2
  %v45 = vadd.f32 %v43, %v44
  %v46 = vrot.slane %v45, 1
  %v47 = vadd.f32 %v45, %v46
  %v48 = vsel %vm40, %v28, 0.0
  %v49 = vrot.slane %v48, 4
  %v50 = vadd.f32 %v48, %v49
  %v51 = vrot.slane %v50, 2
  %v52 = vadd.f32 %v50, %v51
  %v53 = vrot.slane %v52, 1
  %v54 = vadd.f32 %v52, %v53
  %v55 = vsel %vm40, %v17, 0.0
  %v56 = vrot.slane %v55, 4
  %v57 = vadd.f32 %v55, %v56
  %v58 = vrot.slane %v57, 2
  %v59 = vadd.f32 %v57, %v58
  %v60 = vrot.slane %v59, 1
  %v61 = vadd.f32 %v59, %v60
  %v62 = vsel %vm40, %v29, 0.0
  %v63 = vrot.slane %v62, 4
  %v64 = vadd.f32 %v62, %v63
  %v65 = vrot.slane %v64, 2
  %v66 = vadd.f32 %v64, %v65
  %v67 = vrot.slane %v66, 1
  %v68 = vadd.f32 %v66, %v67
  %v69 = vsel %vm40, %v18, 0.0
  %v70 = vrot.slane %v69, 4
  %v71 = vadd.f32 %v69, %v70
  %v72 = vrot.slane %v71, 2
  %v73 = vadd.f32 %v71, %v72
  %v74 = vrot.slane %v73, 1
  %v75 = vadd.f32 %v73, %v74
  %v76 = vsel %vm40, %v30, 0.0
  %v77 = vrot.slane %v76, 4
  %v78 = vadd.f32 %v76, %v77
  %v79 = vrot.slane %v78, 2
  %v80 = vadd.f32 %v78, %v79
  %v81 = vrot.slane %v80, 1
  %v82 = vadd.f32 %v80, %v81
  %v83 = vsel %vm40, %v19, 0.0
  %v84 = vrot.slane %v83, 4
  %v85 = vadd.f32 %v83, %v84
  %v86 = vrot.slane %v85, 2
  %v87 = vadd.f32 %v85, %v86
  %v88 = vrot.slane %v87, 1
  %v89 = vadd.f32 %v87, %v88
  %v90 = vsel %vm40, %v31, 0.0
  %v91 = vrot.slane %v90, 4
  %v92 = vadd.f32 %v90, %v91
  %v93 = vrot.slane %v92, 2
  %v94 = vadd.f32 %v92, %v93
  %v95 = vrot.slane %v94, 1
  %v96 = vadd.f32 %v94, %v95
  %v97 = vsel %vm40, %v20, 0.0
  %v98 = vrot.slane %v97, 4
  %v99 = vadd.f32 %v97, %v98
  %v100 = vrot.slane %v99, 2
  %v101 = vadd.f32 %v99, %v100
  %v102 = vrot.slane %v101, 1
  %v103 = vadd.f32 %v101, %v102
  %v104 = vsel %vm40, %v32, 0.0
  %v105 = vrot.slane %v104, 4
  %v106 = vadd.f32 %v104, %v105
  %v107 = vrot.slane %v106, 2
  %v108 = vadd.f32 %v106, %v107
  %v109 = vrot.slane %v108, 1
  %v110 = vadd.f32 %v108, %v109
  %v111 = vsel %vm40, %v21, 0.0
  %v112 = vrot.slane %v111, 4
  %v113 = vadd.f32 %v111, %v112
  %v114 = vrot.slane %v113, 2
  %v115 = vadd.f32 %v113, %v114
  %v116 = vrot.slane %v115, 1
  %v117 = vadd.f32 %v115, %v116
  %v118 = vsel %vm40, %v33, 0.0
  %v119 = vrot.slane %v118, 4
  %v120 = vadd.f32 %v118, %v119
  %v121 = vrot.slane %v120, 2
  %v122 = vadd.f32 %v120, %v121
  %v123 = vrot.slane %v122, 1
  %v124 = vadd.f32 %v122, %v123
  %v125 = vpack.c.bf16 %v47, %v47
  %v126 = vpack.c.bf16 %v54, %v54
  %v127 = vpack.c.bf16 %v61, %v61
  %v128 = vpack.c.bf16 %v68, %v68
  %v129 = vpack.c.bf16 %v75, %v75
  %v130 = vpack.c.bf16 %v82, %v82
  %v131 = vpack.c.bf16 %v89, %v89
  %v132 = vpack.c.bf16 %v96, %v96
  %v133 = vpack.c.bf16 %v103, %v103
  %v134 = vpack.c.bf16 %v110, %v110
  %v135 = vpack.c.bf16 %v117, %v117
  %v136 = vpack.c.bf16 %v124, %v124
  %v137 = vld [vmem:[%s1] sm:$0xf]
  %v138 = vld [vmem:[%s1 + $0x4] sm:$0xf]
  %v139 = vld [vmem:[%s1 + $0x8] sm:$0xf]
  %v140 = vld [vmem:[%s1 + $0xc] sm:$0xf]
  %v141 = vld [vmem:[%s1 + $0x10] sm:$0xf]
  %v142 = vld [vmem:[%s1 + $0x14] sm:$0xf]
  %v143 = vld [vmem:[%s1 + $0x18] sm:$0xf]
  %v144 = vld [vmem:[%s1 + $0x1c] sm:$0xf]
  %v145 = vld [vmem:[%s1 + $0x20] sm:$0xf]
  %v146 = vld [vmem:[%s1 + $0x24] sm:$0xf]
  %v147 = vld [vmem:[%s1 + $0x28] sm:$0xf]
  %v148 = vld [vmem:[%s1 + $0x2c] sm:$0xf]
  %v149 = vld [vmem:[%s1 + $0x30] sm:$0xf]
  %v150 = vld [vmem:[%s1 + $0x34] sm:$0xf]
  %v151 = vld [vmem:[%s1 + $0x38] sm:$0xf]
  %v152 = vld [vmem:[%s1 + $0x3c] sm:$0xf]
  %v153 = vld [vmem:[%s1 + $0x40] sm:$0xf]
  %v154 = vld [vmem:[%s1 + $0x44] sm:$0xf]
  %v155 = vld [vmem:[%s1 + $0x48] sm:$0xf]
  %v156 = vld [vmem:[%s1 + $0x4c] sm:$0xf]
  %v157 = vld [vmem:[%s1 + $0x50] sm:$0xf]
  %v158 = vld [vmem:[%s1 + $0x54] sm:$0xf]
  %v159 = vld [vmem:[%s1 + $0x58] sm:$0xf]
  %v160 = vld [vmem:[%s1 + $0x5c] sm:$0xf]
  %v161 = vld [vmem:[%s1 + $0x60] sm:$0xf]
  %v162 = vld [vmem:[%s1 + $0x64] sm:$0xf]
  %v163 = vld [vmem:[%s1 + $0x68] sm:$0xf]
  %v164 = vld [vmem:[%s1 + $0x6c] sm:$0xf]
  %v165 = vld [vmem:[%s1 + $0x70] sm:$0xf]
  %v166 = vld [vmem:[%s1 + $0x74] sm:$0xf]
  %v167 = vld [vmem:[%s1 + $0x78] sm:$0xf]
  %v168 = vld [vmem:[%s1 + $0x7c] sm:$0xf]
  %v169 = vld [vmem:[%s1 + $0x80] sm:$0xf]
  %v170 = vld [vmem:[%s1 + $0x84] sm:$0xf]
  %v171 = vld [vmem:[%s1 + $0x88] sm:$0xf]
  %v172 = vld [vmem:[%s1 + $0x8c] sm:$0xf]
  %v173 = vld [vmem:[%s1 + $0x90] sm:$0xf]
  %v174 = vld [vmem:[%s1 + $0x94] sm:$0xf]
  %v175 = vld [vmem:[%s1 + $0x98] sm:$0xf]
  %v176 = vld [vmem:[%s1 + $0x9c] sm:$0xf]
  %v177 = vld [vmem:[%s1 + $0xa0] sm:$0xf]
  %v178 = vld [vmem:[%s1 + $0xa4] sm:$0xf]
  %v179 = vld [vmem:[%s1 + $0xa8] sm:$0xf]
  %v180 = vld [vmem:[%s1 + $0xac] sm:$0xf]
  %v181 = vld [vmem:[%s1 + $0xb0] sm:$0xf]
  %v182 = vld [vmem:[%s1 + $0xb4] sm:$0xf]
  %v183 = vld [vmem:[%s1 + $0xb8] sm:$0xf]
  %v184 = vld [vmem:[%s1 + $0xbc] sm:$0xf]
  %v185 = vld [vmem:[%s1 + $0xc0] sm:$0xf]
  %v186 = vld [vmem:[%s1 + $0xc4] sm:$0xf]
  %v187 = vld [vmem:[%s1 + $0xc8] sm:$0xf]
  %v188 = vld [vmem:[%s1 + $0xcc] sm:$0xf]
  %v189 = vld [vmem:[%s1 + $0xd0] sm:$0xf]
  %v190 = vld [vmem:[%s1 + $0xd4] sm:$0xf]
  %v191 = vld [vmem:[%s1 + $0xd8] sm:$0xf]
  %v192 = vld [vmem:[%s1 + $0xdc] sm:$0xf]
  %v193 = vld [vmem:[%s1 + $0xe0] sm:$0xf]
  %v194 = vld [vmem:[%s1 + $0xe4] sm:$0xf]
  %v195 = vld [vmem:[%s1 + $0xe8] sm:$0xf]
  %v196 = vld [vmem:[%s1 + $0xec] sm:$0xf]
  %v197 = vld [vmem:[%s1 + $0xf0] sm:$0xf]
  %v198 = vld [vmem:[%s1 + $0xf4] sm:$0xf]
  %v199 = vld [vmem:[%s1 + $0xf8] sm:$0xf]
  %v200 = vld [vmem:[%s1 + $0xfc] sm:$0xf]
  %v201 = vld [vmem:[%s1 + $0x100] sm:$0xf]
  %v202 = vld [vmem:[%s1 + $0x104] sm:$0xf]
  %v203 = vld [vmem:[%s1 + $0x108] sm:$0xf]
  %v204 = vld [vmem:[%s1 + $0x10c] sm:$0xf]
  %v205 = vld [vmem:[%s1 + $0x110] sm:$0xf]
  %v206 = vld [vmem:[%s1 + $0x114] sm:$0xf]
  %v207 = vld [vmem:[%s1 + $0x118] sm:$0xf]
  %v208 = vld [vmem:[%s1 + $0x11c] sm:$0xf]
  %v209 = vld [vmem:[%s1 + $0x120] sm:$0xf]
  %v210 = vld [vmem:[%s1 + $0x124] sm:$0xf]
  %v211 = vld [vmem:[%s1 + $0x128] sm:$0xf]
  %v212 = vld [vmem:[%s1 + $0x12c] sm:$0xf]
  %v213 = vld [vmem:[%s1 + $0x130] sm:$0xf]
  %v214 = vld [vmem:[%s1 + $0x134] sm:$0xf]
  %v215 = vld [vmem:[%s1 + $0x138] sm:$0xf]
  %v216 = vld [vmem:[%s1 + $0x13c] sm:$0xf]
  %v217 = vld [vmem:[%s1 + $0x140] sm:$0xf]
  %v218 = vld [vmem:[%s1 + $0x144] sm:$0xf]
  %v219 = vld [vmem:[%s1 + $0x148] sm:$0xf]
  %v220 = vld [vmem:[%s1 + $0x14c] sm:$0xf]
  %v221 = vld [vmem:[%s1 + $0x150] sm:$0xf]
  %v222 = vld [vmem:[%s1 + $0x154] sm:$0xf]
  %v223 = vld [vmem:[%s1 + $0x158] sm:$0xf]
  %v224 = vld [vmem:[%s1 + $0x15c] sm:$0xf]
  %v225 = vld [vmem:[%s1 + $0x160] sm:$0xf]
  %v226 = vld [vmem:[%s1 + $0x164] sm:$0xf]
  %v227 = vld [vmem:[%s1 + $0x168] sm:$0xf]
  %v228 = vld [vmem:[%s1 + $0x16c] sm:$0xf]
  %v229 = vld [vmem:[%s1 + $0x170] sm:$0xf]
  %v230 = vld [vmem:[%s1 + $0x174] sm:$0xf]
  %v231 = vld [vmem:[%s1 + $0x178] sm:$0xf]
  %v232 = vld [vmem:[%s1 + $0x17c] sm:$0xf]
  %v245 = vunpack.c.l.b16 %v125
  %v246 = vunpack.c.l.b16 %v126
  %v247 = vunpack.c.l.b16 %v127
  %v248 = vunpack.c.l.b16 %v128
  %v249 = vunpack.c.l.b16 %v129
  %v250 = vunpack.c.l.b16 %v130
  %v251 = vunpack.c.l.b16 %v131
  %v252 = vunpack.c.l.b16 %v132
  %v253 = vunpack.c.l.b16 %v133
  %v254 = vunpack.c.l.b16 %v134
  %v255 = vunpack.c.l.b16 %v135
  %v256 = vunpack.c.l.b16 %v136
  %vm257 = vcmask 1041409
  %v258 = vsel %vm257, %v251, %v245
  %v259 = vsel %vm257, %v252, %v246
  %v260 = vsel %vm257, %v253, %v247
  %v261 = vsel %vm257, %v254, %v248
  %v262 = vsel %vm257, %v255, %v249
  %v263 = vsel %vm257, %v256, %v250
  %v264 = vpack.c.b16 %v258, %v258
  %v265 = vpack.c.b16 %v259, %v259
  %v266 = vpack.c.b16 %v260, %v260
  %v267 = vpack.c.b16 %v261, %v261
  %v268 = vpack.c.b16 %v262, %v262
  %v269 = vpack.c.b16 %v263, %v263
  %v372 = vunpack.c.l.b16 %v137
  %v373 = vunpack.c.l.b16 %v138
  %v374 = vunpack.c.l.b16 %v139
  %v375 = vunpack.c.l.b16 %v140
  %v376 = vunpack.c.l.b16 %v141
  %v377 = vunpack.c.l.b16 %v142
  %v378 = vunpack.c.l.b16 %v143
  %v379 = vunpack.c.l.b16 %v144
  %v380 = vunpack.c.l.b16 %v145
  %v381 = vunpack.c.l.b16 %v146
  %v382 = vunpack.c.l.b16 %v147
  %v383 = vunpack.c.l.b16 %v148
  %v384 = vunpack.c.l.b16 %v149
  %v385 = vunpack.c.l.b16 %v150
  %v386 = vunpack.c.l.b16 %v151
  %v387 = vunpack.c.l.b16 %v152
  %v388 = vunpack.c.l.b16 %v153
  %v389 = vunpack.c.l.b16 %v154
  %v390 = vunpack.c.l.b16 %v155
  %v391 = vunpack.c.l.b16 %v156
  %v392 = vunpack.c.l.b16 %v157
  %v393 = vunpack.c.l.b16 %v158
  %v394 = vunpack.c.l.b16 %v159
  %v395 = vunpack.c.l.b16 %v160
  %v396 = vunpack.c.l.b16 %v161
  %v397 = vunpack.c.l.b16 %v162
  %v398 = vunpack.c.l.b16 %v163
  %v399 = vunpack.c.l.b16 %v164
  %v400 = vunpack.c.l.b16 %v165
  %v401 = vunpack.c.l.b16 %v166
  %v402 = vunpack.c.l.b16 %v167
  %v403 = vunpack.c.l.b16 %v168
  %v404 = vunpack.c.l.b16 %v169
  %v405 = vunpack.c.l.b16 %v170
  %v406 = vunpack.c.l.b16 %v171
  %v407 = vunpack.c.l.b16 %v172
  %v408 = vunpack.c.l.b16 %v173
  %v409 = vunpack.c.l.b16 %v174
  %v410 = vunpack.c.l.b16 %v175
  %v411 = vunpack.c.l.b16 %v176
  %v412 = vunpack.c.l.b16 %v177
  %v413 = vunpack.c.l.b16 %v178
  %v414 = vunpack.c.l.b16 %v179
  %v415 = vunpack.c.l.b16 %v180
  %v416 = vunpack.c.l.b16 %v181
  %v417 = vunpack.c.l.b16 %v182
  %v418 = vunpack.c.l.b16 %v183
  %v419 = vunpack.c.l.b16 %v184
  %v420 = vunpack.c.l.b16 %v185
  %v421 = vunpack.c.l.b16 %v186
  %v422 = vunpack.c.l.b16 %v187
  %v423 = vunpack.c.l.b16 %v188
  %v424 = vunpack.c.l.b16 %v189
  %v425 = vunpack.c.l.b16 %v190
  %v426 = vunpack.c.l.b16 %v191
  %v427 = vunpack.c.l.b16 %v192
  %v428 = vunpack.c.l.b16 %v193
  %v429 = vunpack.c.l.b16 %v194
  %v430 = vunpack.c.l.b16 %v195
  %v431 = vunpack.c.l.b16 %v196
  %v432 = vunpack.c.l.b16 %v197
  %v433 = vunpack.c.l.b16 %v198
  %v434 = vunpack.c.l.b16 %v199
  %v435 = vunpack.c.l.b16 %v200
  %v436 = vunpack.c.l.b16 %v201
  %v437 = vunpack.c.l.b16 %v202
  %v438 = vunpack.c.l.b16 %v203
  %v439 = vunpack.c.l.b16 %v204
  %v440 = vunpack.c.l.b16 %v205
  %v441 = vunpack.c.l.b16 %v206
  %v442 = vunpack.c.l.b16 %v207
  %v443 = vunpack.c.l.b16 %v208
  %v444 = vunpack.c.l.b16 %v209
  %v445 = vunpack.c.l.b16 %v210
  %v446 = vunpack.c.l.b16 %v211
  %v447 = vunpack.c.l.b16 %v212
  %v448 = vunpack.c.l.b16 %v213
  %v449 = vunpack.c.l.b16 %v214
  %v450 = vunpack.c.l.b16 %v215
  %v451 = vunpack.c.l.b16 %v216
  %v452 = vunpack.c.l.b16 %v217
  %v453 = vunpack.c.l.b16 %v218
  %v454 = vunpack.c.l.b16 %v219
  %v455 = vunpack.c.l.b16 %v220
  %v456 = vunpack.c.l.b16 %v221
  %v457 = vunpack.c.l.b16 %v222
  %v458 = vunpack.c.l.b16 %v223
  %v459 = vunpack.c.l.b16 %v224
  %v460 = vunpack.c.l.b16 %v225
  %v461 = vunpack.c.l.b16 %v226
  %v462 = vunpack.c.l.b16 %v227
  %v463 = vunpack.c.l.b16 %v228
  %v464 = vunpack.c.l.b16 %v229
  %v465 = vunpack.c.l.b16 %v230
  %v466 = vunpack.c.l.b16 %v231
  %v467 = vunpack.c.l.b16 %v232
  %v468 = vpack.c.b16 %v373, %v372
  %v469 = vpack.c.b16 %v375, %v374
  %v470 = vpack.c.b16 %v377, %v376
  %v471 = vpack.c.b16 %v379, %v378
  %v472 = vpack.c.b16 %v381, %v380
  %v473 = vpack.c.b16 %v383, %v382
  %v474 = vpack.c.b16 %v385, %v384
  %v475 = vpack.c.b16 %v387, %v386
  %v476 = vpack.c.b16 %v389, %v388
  %v477 = vpack.c.b16 %v391, %v390
  %v478 = vpack.c.b16 %v393, %v392
  %v479 = vpack.c.b16 %v395, %v394
  %v480 = vpack.c.b16 %v397, %v396
  %v481 = vpack.c.b16 %v399, %v398
  %v482 = vpack.c.b16 %v401, %v400
  %v483 = vpack.c.b16 %v403, %v402
  %v484 = vpack.c.b16 %v405, %v404
  %v485 = vpack.c.b16 %v407, %v406
  %v486 = vpack.c.b16 %v409, %v408
  %v487 = vpack.c.b16 %v411, %v410
  %v488 = vpack.c.b16 %v413, %v412
  %v489 = vpack.c.b16 %v415, %v414
  %v490 = vpack.c.b16 %v417, %v416
  %v491 = vpack.c.b16 %v419, %v418
  %v492 = vpack.c.b16 %v421, %v420
  %v493 = vpack.c.b16 %v423, %v422
  %v494 = vpack.c.b16 %v425, %v424
  %v495 = vpack.c.b16 %v427, %v426
  %v496 = vpack.c.b16 %v429, %v428
  %v497 = vpack.c.b16 %v431, %v430
  %v498 = vpack.c.b16 %v433, %v432
  %v499 = vpack.c.b16 %v435, %v434
  %v500 = vpack.c.b16 %v437, %v436
  %v501 = vpack.c.b16 %v439, %v438
  %v502 = vpack.c.b16 %v441, %v440
  %v503 = vpack.c.b16 %v443, %v442
  %v504 = vpack.c.b16 %v445, %v444
  %v505 = vpack.c.b16 %v447, %v446
  %v506 = vpack.c.b16 %v449, %v448
  %v507 = vpack.c.b16 %v451, %v450
  %v508 = vpack.c.b16 %v453, %v452
  %v509 = vpack.c.b16 %v455, %v454
  %v510 = vpack.c.b16 %v457, %v456
  %v511 = vpack.c.b16 %v459, %v458
  %v512 = vpack.c.b16 %v461, %v460
  %v513 = vpack.c.b16 %v463, %v462
  %v514 = vpack.c.b16 %v465, %v464
  %v515 = vpack.c.b16 %v467, %v466
  %564 = vmatprep.subr.bf16.mxu0 0
  %565 = vmatpush1.bf16.msra.mxu0 %v475
  %566 = vmatprep.subr.bf16.mxu0 0
  %567 = vmatpush1.bf16.msra.mxu0 %v474
  %568 = vmatprep.subr.bf16.mxu0 0
  %569 = vmatpush1.bf16.msra.mxu0 %v473
  %570 = vmatprep.subr.bf16.mxu0 0
  %571 = vmatpush1.bf16.msra.mxu0 %v472
  %572 = vmatprep.subr.bf16.mxu0 0
  %573 = vmatpush1.bf16.msra.mxu0 %v471
  %574 = vmatprep.subr.bf16.mxu0 0
  %575 = vmatpush1.bf16.msra.mxu0 %v470
  %576 = vmatprep.subr.bf16.mxu0 0
  %577 = vmatpush1.bf16.msra.mxu0 %v469
  %578 = vmatprep.subr.bf16.mxu0 0
  %579 = vmatpush1.bf16.msra.mxu0 %v468
  %580 = vmatprep.subr.bf16.mxu0 0
  %581 = vmatpush2.bf16.msra.mxu0 %v483
  %582 = vmatprep.subr.bf16.mxu0 0
  %583 = vmatpush2.bf16.msra.mxu0 %v482
  %584 = vmatprep.subr.bf16.mxu0 0
  %585 = vmatpush2.bf16.msra.mxu0 %v481
  %586 = vmatprep.subr.bf16.mxu0 0
  %587 = vmatpush2.bf16.msra.mxu0 %v480
  %588 = vmatprep.subr.bf16.mxu0 0
  %589 = vmatpush2.bf16.msra.mxu0 %v479
  %590 = vmatprep.subr.bf16.mxu0 0
  %591 = vmatpush2.bf16.msra.mxu0 %v478
  %592 = vmatprep.subr.bf16.mxu0 0
  %593 = vmatpush2.bf16.msra.mxu0 %v477
  %594 = vmatprep.subr.bf16.mxu0 0
  %595 = vmatpush2.bf16.msra.mxu0 %v476
  %596 = vmatprep.mubr.bf16.mxu0 %v265
  %597 = vmatmul.mubr.bf16.gmra.mxu0 %v264
  %v598 = vpop.f32.mrf.mxu0
  %v599 = vadd.f32 0.0, %v598
  %v600 = vpop.f32.mrf.mxu0
  %v601 = vpop.f32.mrf.mxu0
  %v602 = vpop.f32.mrf.mxu0
  %603 = vdwg.mxu0
  %604 = vmatprep.subr.bf16.mxu0 0
  %605 = vmatpush1.bf16.msra.mxu0 %v491
  %606 = vmatprep.subr.bf16.mxu0 0
  %607 = vmatpush1.bf16.msra.mxu0 %v490
  %608 = vmatprep.subr.bf16.mxu0 0
  %609 = vmatpush1.bf16.msra.mxu0 %v489
  %610 = vmatprep.subr.bf16.mxu0 0
  %611 = vmatpush1.bf16.msra.mxu0 %v488
  %612 = vmatprep.subr.bf16.mxu0 0
  %613 = vmatpush1.bf16.msra.mxu0 %v487
  %614 = vmatprep.subr.bf16.mxu0 0
  %615 = vmatpush1.bf16.msra.mxu0 %v486
  %616 = vmatprep.subr.bf16.mxu0 0
  %617 = vmatpush1.bf16.msra.mxu0 %v485
  %618 = vmatprep.subr.bf16.mxu0 0
  %619 = vmatpush1.bf16.msra.mxu0 %v484
  %620 = vmatprep.subr.bf16.mxu0 0
  %621 = vmatpush2.bf16.msra.mxu0 %v499
  %622 = vmatprep.subr.bf16.mxu0 0
  %623 = vmatpush2.bf16.msra.mxu0 %v498
  %624 = vmatprep.subr.bf16.mxu0 0
  %625 = vmatpush2.bf16.msra.mxu0 %v497
  %626 = vmatprep.subr.bf16.mxu0 0
  %627 = vmatpush2.bf16.msra.mxu0 %v496
  %628 = vmatprep.subr.bf16.mxu0 0
  %629 = vmatpush2.bf16.msra.mxu0 %v495
  %630 = vmatprep.subr.bf16.mxu0 0
  %631 = vmatpush2.bf16.msra.mxu0 %v494
  %632 = vmatprep.subr.bf16.mxu0 0
  %633 = vmatpush2.bf16.msra.mxu0 %v493
  %634 = vmatprep.subr.bf16.mxu0 0
  %635 = vmatpush2.bf16.msra.mxu0 %v492
  %636 = vmatprep.mubr.bf16.mxu0 %v267
  %637 = vmatmul.mubr.bf16.gmra.mxu0 %v266
  %v638 = vpop.f32.mrf.mxu0
  %v639 = vadd.f32 %v599, %v638
  %v640 = vpop.f32.mrf.mxu0
  %v641 = vpop.f32.mrf.mxu0
  %v642 = vpop.f32.mrf.mxu0
  %643 = vdwg.mxu0
  %644 = vmatprep.subr.bf16.mxu0 0
  %645 = vmatpush1.bf16.msra.mxu0 %v507
  %646 = vmatprep.subr.bf16.mxu0 0
  %647 = vmatpush1.bf16.msra.mxu0 %v506
  %648 = vmatprep.subr.bf16.mxu0 0
  %649 = vmatpush1.bf16.msra.mxu0 %v505
  %650 = vmatprep.subr.bf16.mxu0 0
  %651 = vmatpush1.bf16.msra.mxu0 %v504
  %652 = vmatprep.subr.bf16.mxu0 0
  %653 = vmatpush1.bf16.msra.mxu0 %v503
  %654 = vmatprep.subr.bf16.mxu0 0
  %655 = vmatpush1.bf16.msra.mxu0 %v502
  %656 = vmatprep.subr.bf16.mxu0 0
  %657 = vmatpush1.bf16.msra.mxu0 %v501
  %658 = vmatprep.subr.bf16.mxu0 0
  %659 = vmatpush1.bf16.msra.mxu0 %v500
  %660 = vmatprep.subr.bf16.mxu0 0
  %661 = vmatpush2.bf16.msra.mxu0 %v515
  %662 = vmatprep.subr.bf16.mxu0 0
  %663 = vmatpush2.bf16.msra.mxu0 %v514
  %664 = vmatprep.subr.bf16.mxu0 0
  %665 = vmatpush2.bf16.msra.mxu0 %v513
  %666 = vmatprep.subr.bf16.mxu0 0
  %667 = vmatpush2.bf16.msra.mxu0 %v512
  %668 = vmatprep.subr.bf16.mxu0 0
  %669 = vmatpush2.bf16.msra.mxu0 %v511
  %670 = vmatprep.subr.bf16.mxu0 0
  %671 = vmatpush2.bf16.msra.mxu0 %v510
  %672 = vmatprep.subr.bf16.mxu0 0
  %673 = vmatpush2.bf16.msra.mxu0 %v509
  %674 = vmatprep.subr.bf16.mxu0 0
  %675 = vmatpush2.bf16.msra.mxu0 %v508
  %676 = vmatprep.mubr.bf16.mxu0 %v269
  %677 = vmatmul.mubr.bf16.gmra.mxu0 %v268
  %v678 = vpop.f32.mrf.mxu0
  %v679 = vadd.f32 %v639, %v678
  %v680 = vpop.f32.mrf.mxu0
  %v681 = vpop.f32.mrf.mxu0
  %v682 = vpop.f32.mrf.mxu0
  %683 = vdwg.mxu0
  %v684 = vand.u32 2147483647, %v679
  %vm685 = vcmask 1041408
  %v686 = vsel %vm685, %v684, 0.0
  %v687 = vrot.slane %v686, 4
  %v688 = vadd.f32 %v686, %v687
  %v689 = vrot.slane %v688, 2
  %v690 = vadd.f32 %v688, %v689
  %v691 = vrot.slane %v690, 1
  %v692 = vadd.f32 %v690, %v691
  %693 = vst [vmem:[%s2] sm:$0x1] %v692
  // Predicated region
  $region10: #{_lambda_.1} parent=0 // pred_check
    _
  $region11: #{_lambda_.1} parent=0 // pred_check_branch
    %695 = sbr.rel (0) target = $region13
  $region12: #{_lambda_.1} parent=0 // pred_region
    _
  $region13: #{_lambda_.1} parent=0 // pred_fallthru
    _
  // Predicated region
  $region14: #{_lambda_.1} parent=0 // pred_check
    _
  $region15: #{_lambda_.1} parent=0 // pred_check_branch
    %697 = sbr.rel (0) target = $region17
  $region16: #{_lambda_.1} parent=0 // pred_region
    _
  $region17: #{_lambda_.1} parent=0 // pred_fallthru
    _

</llo_original>
